<compile_context>
chip_gen: v5e
topology: v5e:2x2
jax: 0.10.0
libtpu: 0.0.40
codegen_flags: <defaults>
</compile_context>

<pallas_src>
import functools

import jax
import jax.numpy as jnp
from jax.experimental import pallas as pl
from jax.experimental.pallas import tpu as pltpu


# --------------------------------------------------------------------------- #
# Kernel
# --------------------------------------------------------------------------- #
def _gl_infonce_kernel(temperature, tm, pos_hard_mining, neg_hard_mining,
                       weakshot, emit_ssim,
                       k_ref, labq_ref, labk_ref, *out_refs):
    if emit_ssim:
        ssim_ref, loss_ref = out_refs
    else:
        (loss_ref,) = out_refs

    t = jnp.float32(temperature)
    row0 = pl.multiple_of(pl.program_id(0) * tm, tm)

    # Keys are already L2-normalized (and optionally bf16) from the wrapper.
    # The query tile is a slice of the resident key block: no extra DMA and no
    # per-step renormalization of the full key matrix.
    kn = k_ref[...]                                   # (m, d) resident keys
    qn = k_ref[pl.ds(row0, tm), :]                    # (tm, d) query tile

    # Cosine similarity (== 1 - batch_cos_dist) on the MXU, f32 accumulation.
    ssim = jax.lax.dot_general(qn, kn, (((1,), (1,)), ((), ())),
                               preferred_element_type=jnp.float32)   # (tm, m)
    if emit_ssim:
        ssim_ref[...] = ssim.astype(ssim_ref.dtype)

    # ---- pair masks (pure VPU broadcast compares) ---------------------------
    lab_q = labq_ref[:, 0:1]            # (tm, 1) int32
    lt_q = labq_ref[:, 1:2]             # (tm, 1) int32
    lab_k = labk_ref[0:1, :]            # (1, m)  int32
    lt_k = labk_ref[1:2, :]             # (1, m)  int32

    hp_mask = lab_q == lab_k                                   # positives
    hn_mask = lab_q != lab_k
    if weakshot:
        thn_mask = jnp.logical_and(
            hn_mask, jnp.logical_or(lt_q > 0, (lt_q - lt_k) < 0))
    else:
        thn_mask = hn_mask

    # ---- negatives -----------------------------------------------------------
    if neg_hard_mining:
        hn_max = jnp.max(jnp.where(thn_mask, ssim, jnp.float32(-1e30)),
                         axis=1, keepdims=True)                # (tm, 1)
        neg_expsum = jnp.exp(hn_max * t)
    else:
        neg_expsum = None                                      # from ez below

    # ---- positives + InfoNCE:  -log(e/(e+S)) == log(e+S) - log(e) -----------
    if pos_hard_mining:
        hp_min = jnp.min(jnp.where(hp_mask, ssim, jnp.float32(1e30)),
                         axis=1, keepdims=True)                # (tm, 1)
        if neg_expsum is None:
            neg_expsum = jnp.sum(jnp.where(thn_mask, jnp.exp(ssim * t), 0.0),
                                 axis=1, keepdims=True)
        pm = hp_min * t
        row_loss = jnp.log(jnp.exp(pm) + neg_expsum) - pm
    else:
        # Ordered so the positive sums of st are taken before exp/log terms,
        # keeping at most ~2 (tm, m) f32 temporaries live simultaneously.
        st = ssim * t
        pos_cnt = jnp.sum(hp_mask.astype(jnp.float32), axis=1, keepdims=True)
        pos_st_sum = jnp.sum(jnp.where(hp_mask, st, 0.0), axis=1, keepdims=True)
        ez = jnp.exp(st)
        if neg_expsum is None:
            neg_expsum = jnp.sum(jnp.where(thn_mask, ez, 0.0),
                                 axis=1, keepdims=True)
        lg = jnp.log(ez + neg_expsum)
        pos_lg_sum = jnp.sum(jnp.where(hp_mask, lg, 0.0), axis=1, keepdims=True)
        row_loss = (pos_lg_sum - pos_st_sum) / pos_cnt

    loss_ref[...] = row_loss


# --------------------------------------------------------------------------- #
# Tile / VMEM sizing helpers
# --------------------------------------------------------------------------- #
def _pad_bytes(rows, cols, itemsize):
    return ((rows + 7) // 8) * 8 * ((cols + 127) // 128) * 128 * itemsize


def _vmem_capacity_bytes():
    try:
        return int(pltpu.get_tpu_info().vmem_capacity_bytes)
    except Exception:
        return 64 << 20            # conservative default (v7x per-TC VMEM)


def _step_vmem_bytes(tm, m, d, key_bytes, ssim_bytes):
    resident = _pad_bytes(m, d, key_bytes) + _pad_bytes(2, m, 4)   # Buffered(1)
    pipelined = 2 * (_pad_bytes(tm, 2, 4) + _pad_bytes(tm, 1, 4))
    if ssim_bytes:
        pipelined += 2 * _pad_bytes(tm, m, ssim_bytes)
    temps = 5 * _pad_bytes(tm, m, 4)   # st / ez / lg / masks / where-selects
    return resident + pipelined + temps + (2 << 20)


def _pick_row_tile(m, d, key_bytes, ssim_bytes, vmem_cap):
    budget = int(vmem_cap * 0.75)
    for tm in (512, 256, 128, 64, 32, 16, 8):
        if m % tm == 0 and _step_vmem_bytes(tm, m, d, key_bytes,
                                            ssim_bytes) <= budget:
            return tm
    for tm in (8, 16, 32, 64, 128, 256, 512):
        if m % tm == 0:
            return tm
    return m


# --------------------------------------------------------------------------- #
# Wrapper
# --------------------------------------------------------------------------- #
def gl_infonce_loss(feature, label, label_type, *, temperature,
                    pos_hard_mining=False, neg_hard_mining=False, weakshot=True,
                    use_bf16_matmul=True, return_ssim=True,
                    ssim_dtype=jnp.float32, block_rows=None):
    """Returns (loss_scalar, ssim[m, m] or None) — same as GlInfoNCELoss.forward."""
    m, d = feature.shape

    # L2 normalize ONCE in the wrapper (one fused XLA op). Matches
    # F.normalize(p=2, eps=1e-12): x / max(||x||, 1e-12).
    x = feature.astype(jnp.float32)
    x_inv = jax.lax.rsqrt(jnp.maximum(jnp.sum(x * x, axis=1, keepdims=True),
                                      jnp.float32(1e-24)))
    feat = x * x_inv
    if use_bf16_matmul:
        feat = feat.astype(jnp.bfloat16)       # native MXU path; f32 accumulate

    lab = label.astype(jnp.int32)
    lt = label_type.astype(jnp.int32)
    labels_col = jnp.stack([lab, lt], axis=1)  # (m, 2) per-query-row view
    labels_row = jnp.stack([lab, lt], axis=0)  # (2, m) per-key-col view

    key_bytes = feat.dtype.itemsize
    ssim_bytes = jnp.dtype(ssim_dtype).itemsize if return_ssim else 0
    vmem_cap = _vmem_capacity_bytes()
    tm = (block_rows if block_rows is not None
          else _pick_row_tile(m, d, key_bytes, ssim_bytes, vmem_cap))
    assert m % tm == 0, "row tile must divide the number of samples"
    nt = m // tm

    need = _step_vmem_bytes(tm, m, d, key_bytes, ssim_bytes)
    vmem_limit = int(min(max(int(need * 1.25), 16 << 20), int(vmem_cap * 0.9)))

    if pos_hard_mining and neg_hard_mining:
        trans = 4 * m
    elif pos_hard_mining:
        trans = m * m + 2 * m
    else:
        trans = 2 * m * m + (m if neg_hard_mining else 0)
    cost = pl.CostEstimate(
        flops=2 * m * m * d + 12 * m * m,
        transcendentals=int(trans),
        bytes_accessed=m * d * key_bytes + m * m * ssim_bytes + 4 * 5 * m)

    kernel = functools.partial(
        _gl_infonce_kernel, float(temperature), int(tm),
        bool(pos_hard_mining), bool(neg_hard_mining), bool(weakshot),
        bool(return_ssim))

    def build(resident_pipeline_mode):
        res_kw = ({} if resident_pipeline_mode is None
                  else {"pipeline_mode": resident_pipeline_mode})
        in_specs = [
            # full normalized keys: constant block index -> resident
            pl.BlockSpec((m, d), lambda i: (0, 0), **res_kw),
            pl.BlockSpec((tm, 2), lambda i: (i, 0)),           # [label, type] rows
            pl.BlockSpec((2, m), lambda i: (0, 0), **res_kw),  # [label, type] cols
        ]
        out_specs, out_shape = [], []
        if return_ssim:
            out_specs.append(pl.BlockSpec((tm, m), lambda i: (i, 0)))
            out_shape.append(jax.ShapeDtypeStruct((m, m), ssim_dtype))
        out_specs.append(pl.BlockSpec((tm, 1), lambda i: (i, 0)))
        out_shape.append(jax.ShapeDtypeStruct((m, 1), jnp.float32))
        return pl.pallas_call(
            kernel,
            grid=(nt,),
            in_specs=in_specs,
            out_specs=out_specs,
            out_shape=out_shape,
            compiler_params=pltpu.CompilerParams(
                dimension_semantics=("parallel",),
                vmem_limit_bytes=vmem_limit),
            cost_estimate=cost,
        )

    try:
        outs = build(pl.Buffered(1))(feat, labels_col, labels_row)
    except Exception:
        # pipeline_mode=Buffered(1) unsupported in this build: fall back to the
        # default double buffering (costs one extra resident key buffer only).
        outs = build(None)(feat, labels_col, labels_row)

    if return_ssim:
        ssim, loss_rows = outs
    else:
        (loss_rows,) = outs if isinstance(outs, (list, tuple)) else (outs,)
        ssim = None

    # Tiny final reduction (mean over anchors) done by XLA in the wrapper.
    # TODO(synk): emitting one per-tile partial sum instead of (tm, 1) rows
    # would dodge the masked-store epilogue; kept per-row for simplicity.
    return jnp.mean(loss_rows), ssim


# --------------------------------------------------------------------------- #
# Pure-JAX reference (mirrors the PyTorch forward, incl. mining flags)
# --------------------------------------------------------------------------- #
def _reference(feature, label, label_type, temperature,
               pos_hard_mining=False, neg_hard_mining=False, weakshot=True):
    x = feature.astype(jnp.float32)
    xn = x / jnp.maximum(jnp.linalg.norm(x, axis=1, keepdims=True), 1e-12)
    ssim = xn @ xn.T
    hp = label[:, None] == label[None, :]
    hn = label[:, None] != label[None, :]
    if weakshot:
        thn = hn & ((label_type[:, None] > 0) |
                    ((label_type[:, None] - label_type[None, :]) < 0))
    else:
        thn = hn
    t = temperature
    if neg_hard_mining:
        hn_ssim = jnp.max(jnp.where(thn, ssim, -jnp.inf), axis=1, keepdims=True)
        hn_expsum = jnp.exp(hn_ssim * t)
    else:
        hn_expsum = jnp.sum(jnp.where(thn, jnp.exp(ssim * t), 0.0),
                            axis=1, keepdims=True)
    if pos_hard_mining:
        hp_ssim = jnp.min(jnp.where(hp, ssim, jnp.inf), axis=1, keepdims=True)
        e = jnp.exp(hp_ssim * t)
        row = -jnp.log(e / (e + hn_expsum))
    else:
        e = jnp.exp(ssim * t)
        le = -jnp.log(e / (e + hn_expsum))
        cnt = jnp.sum(hp, axis=1, keepdims=True)
        row = jnp.sum(jnp.where(hp, le, 0.0), axis=1, keepdims=True) / cnt
    return jnp.mean(row), ssim


# --------------------------------------------------------------------------- #
# Self-test
# --------------------------------------------------------------------------- #
if __name__ == "__main__":
    key = jax.random.PRNGKey(0)
    kf, kl, kt = jax.random.split(key, 3)

    m, d = 8, 32                     # batch_size (num samples), feat_dim
    temperature = 16.0

    feature = jax.random.normal(kf, (m, d), dtype=jnp.float32)
    label = jax.random.randint(kl, (m,), 0, 4, dtype=jnp.int32)
    label_type = jax.random.randint(kt, (m,), 0, 2, dtype=jnp.int32)

    # Exact-precision path (f32 matmul) vs reference, all mining-flag combos.
    for ph in (False, True):
        for nh in (False, True):
            loss, ssim = gl_infonce_loss(
                feature, label, label_type, temperature=temperature,
                pos_hard_mining=ph, neg_hard_mining=nh, use_bf16_matmul=False)
            jax.block_until_ready((loss, ssim))
            rl, rs = _reference(feature, label, label_type, temperature, ph, nh)
            assert jnp.allclose(ssim, rs, atol=1e-5, rtol=1e-5), (ph, nh)
            assert jnp.allclose(loss, rl, atol=1e-5, rtol=1e-5), (ph, nh)

    # Multi-tile grid (nt > 1) exercises the dynamic query slice, f32 path.
    m2, d2 = 32, 64
    kf2, kl2, kt2 = jax.random.split(jax.random.PRNGKey(1), 3)
    feature2 = jax.random.normal(kf2, (m2, d2), dtype=jnp.float32)
    label2 = jax.random.randint(kl2, (m2,), 0, 5, dtype=jnp.int32)
    label_type2 = jax.random.randint(kt2, (m2,), 0, 2, dtype=jnp.int32)
    loss2, ssim2 = gl_infonce_loss(feature2, label2, label_type2,
                                   temperature=temperature,
                                   use_bf16_matmul=False, block_rows=8)
    jax.block_until_ready((loss2, ssim2))
    rl2, rs2 = _reference(feature2, label2, label_type2, temperature)
    assert jnp.allclose(ssim2, rs2, atol=1e-5, rtol=1e-5)
    assert jnp.allclose(loss2, rl2, atol=1e-5, rtol=1e-5)

    # Default fast path: bf16 MXU matmul (looser tolerance) + loss-only mode.
    loss_bf, ssim_bf = gl_infonce_loss(feature, label, label_type,
                                       temperature=temperature)
    jax.block_until_ready((loss_bf, ssim_bf))
    rl, rs = _reference(feature, label, label_type, temperature)
    assert jnp.allclose(ssim_bf, rs, atol=2e-2, rtol=2e-2)
    assert jnp.allclose(loss_bf, rl, atol=2.5e-1, rtol=2e-1)

    loss_only, none_ssim = gl_infonce_loss(feature, label, label_type,
                                           temperature=temperature,
                                           return_ssim=False)
    jax.block_until_ready(loss_only)
    assert none_ssim is None
    assert jnp.allclose(loss_only, loss_bf, atol=1e-6, rtol=1e-6)

    # TODO(synk): print_pair_acc / print_pos_neg_acc diagnostics and the
    # random_seed counter are host-side utilities with no kernel equivalent.

    print("KERNEL_OK")
</pallas_src>

<mosaic_0001>
module attributes {stable_mosaic.version = 11 : i64} {
  func.func @_gl_infonce_kernel(%arg0: i32, %arg1: memref<8x32xf32, #tpu.memory_space<vmem>>, %arg2: memref<8x2xi32, #tpu.memory_space<vmem>>, %arg3: memref<2x8xi32, #tpu.memory_space<vmem>>, %arg4: memref<8x8xf32, #tpu.memory_space<vmem>>, %arg5: memref<8x1xf32, #tpu.memory_space<vmem>>) attributes {dimension_semantics = [#tpu.dimension_semantics<parallel>], iteration_bounds = array<i64: 1>, scalar_prefetch = 0 : i64, scratch_operands = 0 : i64, tpu.core_type = #tpu.core_type<tc>, window_params = [{pipeline_mode = #tpu.pipeline_mode<synchronous>, transform_indices = @transform_0, window_bounds = array<i64: 8, 32>}, {transform_indices = @transform_1, window_bounds = array<i64: 8, 2>}, {pipeline_mode = #tpu.pipeline_mode<synchronous>, transform_indices = @transform_2, window_bounds = array<i64: 2, 8>}, {transform_indices = @transform_3, window_bounds = array<i64: 8, 8>}, {transform_indices = @transform_4, window_bounds = array<i64: 8, 1>}]} {
    %c8_i32 = arith.constant 8 : i32
    %0 = arith.muli %arg0, %c8_i32 : i32
    %1 = tpu.assume_multiple %0, 8 : i32
    %c0 = arith.constant 0 : index
    %c0_0 = arith.constant 0 : index
    %2 = vector.load %arg1[%c0, %c0_0] : memref<8x32xf32, #tpu.memory_space<vmem>>, vector<8x32xf32>
    %3 = arith.index_cast %1 : i32 to index
    %c0_1 = arith.constant 0 : index
    %4 = vector.load %arg1[%3, %c0_1] : memref<8x32xf32, #tpu.memory_space<vmem>>, vector<8x32xf32>
    %cst = arith.constant dense<0.000000e+00> : vector<8x8xf32>
    %5 = tpu.matmul %4, %2, %cst {dimension_numbers = #tpu.dot_dimension_numbers<[1], [1], [0], [0], [0, 0, 1, 0], [], []>} : vector<8x32xf32>, vector<8x32xf32>, vector<8x8xf32> -> vector<8x8xf32>
    %c0_2 = arith.constant 0 : index
    %c0_3 = arith.constant 0 : index
    %6 = vector.load %arg4[%c0_2, %c0_3] : memref<8x8xf32, #tpu.memory_space<vmem>>, vector<8x8xf32>
    tpu.vector_store %arg4[%c0_2, %c0_3], %5 {strides = array<i32>} : memref<8x8xf32, #tpu.memory_space<vmem>>, vector<8x8xf32>,
    %c0_4 = arith.constant 0 : index
    %c0_5 = arith.constant 0 : index
    %7 = vector.load %arg2[%c0_4, %c0_5] : memref<8x2xi32, #tpu.memory_space<vmem>>, vector<8x1xi32>
    %c0_6 = arith.constant 0 : index
    %c1 = arith.constant 1 : index
    %8 = vector.load %arg2[%c0_6, %c1] : memref<8x2xi32, #tpu.memory_space<vmem>>, vector<8x1xi32>
    %c0_7 = arith.constant 0 : index
    %c0_8 = arith.constant 0 : index
    %9 = vector.load %arg3[%c0_7, %c0_8] : memref<2x8xi32, #tpu.memory_space<vmem>>, vector<1x8xi32>
    %c1_9 = arith.constant 1 : index
    %c0_10 = arith.constant 0 : index
    %10 = vector.load %arg3[%c1_9, %c0_10] : memref<2x8xi32, #tpu.memory_space<vmem>>, vector<1x8xi32>
    %11 = vector.broadcast %7 : vector<8x1xi32> to vector<8x8xi32>
    %12 = vector.broadcast %9 : vector<1x8xi32> to vector<8x8xi32>
    %13 = arith.cmpi eq, %11, %12 : vector<8x8xi32>
    %14 = vector.broadcast %7 : vector<8x1xi32> to vector<8x8xi32>
    %15 = vector.broadcast %9 : vector<1x8xi32> to vector<8x8xi32>
    %16 = arith.cmpi ne, %14, %15 : vector<8x8xi32>
    %c0_i32 = arith.constant 0 : i32
    %17 = vector.broadcast %c0_i32 : i32 to vector<8x1xi32>
    %18 = arith.cmpi sgt, %8, %17 : vector<8x1xi32>
    %19 = vector.broadcast %8 : vector<8x1xi32> to vector<8x8xi32>
    %20 = vector.broadcast %10 : vector<1x8xi32> to vector<8x8xi32>
    %21 = arith.subi %19, %20 : vector<8x8xi32>
    %c0_i32_11 = arith.constant 0 : i32
    %22 = vector.broadcast %c0_i32_11 : i32 to vector<8x8xi32>
    %23 = arith.cmpi slt, %21, %22 : vector<8x8xi32>
    %24 = vector.broadcast %18 : vector<8x1xi1> to vector<8x8xi1>
    %25 = arith.ori %24, %23 : vector<8x8xi1>
    %26 = arith.andi %16, %25 : vector<8x8xi1>
    %cst_12 = arith.constant 1.600000e+01 : f32
    %27 = vector.broadcast %cst_12 : f32 to vector<8x8xf32>
    %28 = arith.mulf %5, %27 : vector<8x8xf32>
    %29 = arith.extui %13 : vector<8x8xi1> to vector<8x8xi32>
    %30 = arith.sitofp %29 : vector<8x8xi32> to vector<8x8xf32>
    %cst_13 = arith.constant dense<0.000000e+00> : vector<8xf32>
    %31 = vector.multi_reduction <add>, %30, %cst_13 [1] : vector<8x8xf32> to vector<8xf32>
    %32 = vector.shape_cast %31 : vector<8xf32> to vector<8x1xf32>
    %cst_14 = arith.constant 0.000000e+00 : f32
    %33 = vector.broadcast %cst_14 : f32 to vector<8x8xf32>
    %34 = arith.select %13, %28, %33 : vector<8x8xi1>, vector<8x8xf32>
    %cst_15 = arith.constant dense<0.000000e+00> : vector<8xf32>
    %35 = vector.multi_reduction <add>, %34, %cst_15 [1] : vector<8x8xf32> to vector<8xf32>
    %36 = vector.shape_cast %35 : vector<8xf32> to vector<8x1xf32>
    %37 = math.exp %28 : vector<8x8xf32>
    %cst_16 = arith.constant 0.000000e+00 : f32
    %38 = vector.broadcast %cst_16 : f32 to vector<8x8xf32>
    %39 = arith.select %26, %37, %38 : vector<8x8xi1>, vector<8x8xf32>
    %cst_17 = arith.constant dense<0.000000e+00> : vector<8xf32>
    %40 = vector.multi_reduction <add>, %39, %cst_17 [1] : vector<8x8xf32> to vector<8xf32>
    %41 = vector.shape_cast %40 : vector<8xf32> to vector<8x1xf32>
    %42 = vector.broadcast %41 : vector<8x1xf32> to vector<8x8xf32>
    %43 = arith.addf %37, %42 : vector<8x8xf32>
    %44 = math.log %43 : vector<8x8xf32>
    %cst_18 = arith.constant 0.000000e+00 : f32
    %45 = vector.broadcast %cst_18 : f32 to vector<8x8xf32>
    %46 = arith.select %13, %44, %45 : vector<8x8xi1>, vector<8x8xf32>
    %cst_19 = arith.constant dense<0.000000e+00> : vector<8xf32>
    %47 = vector.multi_reduction <add>, %46, %cst_19 [1] : vector<8x8xf32> to vector<8xf32>
    %48 = vector.shape_cast %47 : vector<8xf32> to vector<8x1xf32>
    %49 = arith.subf %48, %36 : vector<8x1xf32>
    %50 = arith.divf %49, %32 : vector<8x1xf32>
    %c0_20 = arith.constant 0 : index
    %c0_21 = arith.constant 0 : index
    %51 = vector.load %arg5[%c0_20, %c0_21] : memref<8x1xf32, #tpu.memory_space<vmem>>, vector<8x1xf32>
    tpu.vector_store %arg5[%c0_20, %c0_21], %50 {strides = array<i32>} : memref<8x1xf32, #tpu.memory_space<vmem>>, vector<8x1xf32>,
    return
  }
  func.func @transform_0(%arg0: i32) -> (i32, i32) {
    %c0_i32 = arith.constant 0 : i32
    %c0_i32_0 = arith.constant 0 : i32
    %c0_i32_1 = arith.constant 0 : i32
    return %c0_i32, %c0_i32_0 : i32, i32
  }
  func.func @transform_1(%arg0: i32) -> (i32, i32) {
    %c0_i32 = arith.constant 0 : i32
    %c0_i32_0 = arith.constant 0 : i32
    return %arg0, %c0_i32 : i32, i32
  }
  func.func @transform_2(%arg0: i32) -> (i32, i32) {
    %c0_i32 = arith.constant 0 : i32
    %c0_i32_0 = arith.constant 0 : i32
    %c0_i32_1 = arith.constant 0 : i32
    return %c0_i32, %c0_i32_0 : i32, i32
  }
  func.func @transform_3(%arg0: i32) -> (i32, i32) {
    %c0_i32 = arith.constant 0 : i32
    %c0_i32_0 = arith.constant 0 : i32
    return %arg0, %c0_i32 : i32, i32
  }
  func.func @transform_4(%arg0: i32) -> (i32, i32) {
    %c0_i32 = arith.constant 0 : i32
    %c0_i32_0 = arith.constant 0 : i32
    return %arg0, %c0_i32 : i32, i32
  }
}

module attributes {stable_mosaic.version = 11 : i64} {
  func.func @_gl_infonce_kernel(%arg0: i32, %arg1: memref<8x32xf32, #tpu.memory_space<vmem>>, %arg2: memref<8x2xi32, #tpu.memory_space<vmem>>, %arg3: memref<2x8xi32, #tpu.memory_space<vmem>>, %arg4: memref<8x8xf32, #tpu.memory_space<vmem>>, %arg5: memref<8x1xf32, #tpu.memory_space<vmem>>) attributes {dimension_semantics = [#tpu.dimension_semantics<parallel>], iteration_bounds = array<i64: 1>, scalar_prefetch = 0 : i64, scratch_operands = 0 : i64, tpu.core_type = #tpu.core_type<tc>, window_params = [{pipeline_mode = #tpu.pipeline_mode<synchronous>, transform_indices = @transform_0, window_bounds = array<i64: 8, 32>}, {transform_indices = @transform_1, window_bounds = array<i64: 8, 2>}, {pipeline_mode = #tpu.pipeline_mode<synchronous>, transform_indices = @transform_2, window_bounds = array<i64: 2, 8>}, {transform_indices = @transform_3, window_bounds = array<i64: 8, 8>}, {transform_indices = @transform_4, window_bounds = array<i64: 8, 1>}]} {
    %c8_i32 = arith.constant 8 : i32
    %0 = arith.muli %arg0, %c8_i32 : i32
    %1 = tpu.assume_multiple %0, 8 : i32
    %c0 = arith.constant 0 : index
    %c0_0 = arith.constant 0 : index
    %2 = vector.load %arg1[%c0, %c0_0] : memref<8x32xf32, #tpu.memory_space<vmem>>, vector<8x32xf32>
    %3 = arith.index_cast %1 : i32 to index
    %c0_1 = arith.constant 0 : index
    %4 = vector.load %arg1[%3, %c0_1] : memref<8x32xf32, #tpu.memory_space<vmem>>, vector<8x32xf32>
    %cst = arith.constant dense<0.000000e+00> : vector<8x8xf32>
    %5 = tpu.matmul %4, %2, %cst {dimension_numbers = #tpu.dot_dimension_numbers<[1], [1], [0], [0], [0, 0, 1, 0], [], []>} : vector<8x32xf32>, vector<8x32xf32>, vector<8x8xf32> -> vector<8x8xf32>
    %c0_2 = arith.constant 0 : index
    %c0_3 = arith.constant 0 : index
    %6 = vector.load %arg4[%c0_2, %c0_3] : memref<8x8xf32, #tpu.memory_space<vmem>>, vector<8x8xf32>
    tpu.vector_store %arg4[%c0_2, %c0_3], %5 {strides = array<i32>} : memref<8x8xf32, #tpu.memory_space<vmem>>, vector<8x8xf32>,
    %c0_4 = arith.constant 0 : index
    %c0_5 = arith.constant 0 : index
    %7 = vector.load %arg2[%c0_4, %c0_5] : memref<8x2xi32, #tpu.memory_space<vmem>>, vector<8x1xi32>
    %c0_6 = arith.constant 0 : index
    %c1 = arith.constant 1 : index
    %8 = vector.load %arg2[%c0_6, %c1] : memref<8x2xi32, #tpu.memory_space<vmem>>, vector<8x1xi32>
    %c0_7 = arith.constant 0 : index
    %c0_8 = arith.constant 0 : index
    %9 = vector.load %arg3[%c0_7, %c0_8] : memref<2x8xi32, #tpu.memory_space<vmem>>, vector<1x8xi32>
    %c1_9 = arith.constant 1 : index
    %c0_10 = arith.constant 0 : index
    %10 = vector.load %arg3[%c1_9, %c0_10] : memref<2x8xi32, #tpu.memory_space<vmem>>, vector<1x8xi32>
    %11 = vector.broadcast %7 : vector<8x1xi32> to vector<8x8xi32>
    %12 = vector.broadcast %9 : vector<1x8xi32> to vector<8x8xi32>
    %13 = arith.cmpi eq, %11, %12 : vector<8x8xi32>
    %14 = vector.broadcast %7 : vector<8x1xi32> to vector<8x8xi32>
    %15 = vector.broadcast %9 : vector<1x8xi32> to vector<8x8xi32>
    %16 = arith.cmpi ne, %14, %15 : vector<8x8xi32>
    %c0_i32 = arith.constant 0 : i32
    %17 = vector.broadcast %c0_i32 : i32 to vector<8x1xi32>
    %18 = arith.cmpi sgt, %8, %17 : vector<8x1xi32>
    %19 = vector.broadcast %8 : vector<8x1xi32> to vector<8x8xi32>
    %20 = vector.broadcast %10 : vector<1x8xi32> to vector<8x8xi32>
    %21 = arith.subi %19, %20 : vector<8x8xi32>
    %c0_i32_11 = arith.constant 0 : i32
    %22 = vector.broadcast %c0_i32_11 : i32 to vector<8x8xi32>
    %23 = arith.cmpi slt, %21, %22 : vector<8x8xi32>
    %24 = vector.broadcast %18 : vector<8x1xi1> to vector<8x8xi1>
    %25 = arith.ori %24, %23 : vector<8x8xi1>
    %26 = arith.andi %16, %25 : vector<8x8xi1>
    %cst_12 = arith.constant 1.600000e+01 : f32
    %27 = vector.broadcast %cst_12 : f32 to vector<8x8xf32>
    %28 = arith.mulf %5, %27 : vector<8x8xf32>
    %29 = arith.extui %13 : vector<8x8xi1> to vector<8x8xi32>
    %30 = arith.sitofp %29 : vector<8x8xi32> to vector<8x8xf32>
    %cst_13 = arith.constant dense<0.000000e+00> : vector<8xf32>
    %31 = vector.multi_reduction <add>, %30, %cst_13 [1] : vector<8x8xf32> to vector<8xf32>
    %32 = vector.shape_cast %31 : vector<8xf32> to vector<8x1xf32>
    %cst_14 = arith.constant 0.000000e+00 : f32
    %33 = vector.broadcast %cst_14 : f32 to vector<8x8xf32>
    %34 = arith.select %13, %28, %33 : vector<8x8xi1>, vector<8x8xf32>
    %cst_15 = arith.constant dense<0.000000e+00> : vector<8xf32>
    %35 = vector.multi_reduction <add>, %34, %cst_15 [1] : vector<8x8xf32> to vector<8xf32>
    %36 = vector.shape_cast %35 : vector<8xf32> to vector<8x1xf32>
    %37 = math.exp %28 : vector<8x8xf32>
    %cst_16 = arith.constant 0.000000e+00 : f32
    %38 = vector.broadcast %cst_16 : f32 to vector<8x8xf32>
    %39 = arith.select %26, %37, %38 : vector<8x8xi1>, vector<8x8xf32>
    %cst_17 = arith.constant dense<0.000000e+00> : vector<8xf32>
    %40 = vector.multi_reduction <add>, %39, %cst_17 [1] : vector<8x8xf32> to vector<8xf32>
    %41 = vector.shape_cast %40 : vector<8xf32> to vector<8x1xf32>
    %42 = vector.broadcast %41 : vector<8x1xf32> to vector<8x8xf32>
    %43 = arith.addf %37, %42 : vector<8x8xf32>
    %44 = math.log %43 : vector<8x8xf32>
    %cst_18 = arith.constant 0.000000e+00 : f32
    %45 = vector.broadcast %cst_18 : f32 to vector<8x8xf32>
    %46 = arith.select %13, %44, %45 : vector<8x8xi1>, vector<8x8xf32>
    %cst_19 = arith.constant dense<0.000000e+00> : vector<8xf32>
    %47 = vector.multi_reduction <add>, %46, %cst_19 [1] : vector<8x8xf32> to vector<8xf32>
    %48 = vector.shape_cast %47 : vector<8xf32> to vector<8x1xf32>
    %49 = arith.subf %48, %36 : vector<8x1xf32>
    %50 = arith.divf %49, %32 : vector<8x1xf32>
    %c0_20 = arith.constant 0 : index
    %c0_21 = arith.constant 0 : index
    %51 = vector.load %arg5[%c0_20, %c0_21] : memref<8x1xf32, #tpu.memory_space<vmem>>, vector<8x1xf32>
    tpu.vector_store %arg5[%c0_20, %c0_21], %50 {strides = array<i32>} : memref<8x1xf32, #tpu.memory_space<vmem>>, vector<8x1xf32>,
    return
  }
  func.func @transform_0(%arg0: i32) -> (i32, i32) {
    %c0_i32 = arith.constant 0 : i32
    %c0_i32_0 = arith.constant 0 : i32
    %c0_i32_1 = arith.constant 0 : i32
    return %c0_i32, %c0_i32_0 : i32, i32
  }
  func.func @transform_1(%arg0: i32) -> (i32, i32) {
    %c0_i32 = arith.constant 0 : i32
    %c0_i32_0 = arith.constant 0 : i32
    return %arg0, %c0_i32 : i32, i32
  }
  func.func @transform_2(%arg0: i32) -> (i32, i32) {
    %c0_i32 = arith.constant 0 : i32
    %c0_i32_0 = arith.constant 0 : i32
    %c0_i32_1 = arith.constant 0 : i32
    return %c0_i32, %c0_i32_0 : i32, i32
  }
  func.func @transform_3(%arg0: i32) -> (i32, i32) {
    %c0_i32 = arith.constant 0 : i32
    %c0_i32_0 = arith.constant 0 : i32
    return %arg0, %c0_i32 : i32, i32
  }
  func.func @transform_4(%arg0: i32) -> (i32, i32) {
    %c0_i32 = arith.constant 0 : i32
    %c0_i32_0 = arith.constant 0 : i32
    return %arg0, %c0_i32 : i32, i32
  }
}

</mosaic_0001>

<llo_original>
// kernel: tpu_custom_call.1
$region0: #{tpu_custom_call.1}
  #allocation0 [shape = 'u32[]', space=smem, size = 0x4, offset = 0x4, fixed_abs, tag = 'smem constant byte address 0x4 - core index']
  #allocation1 [shape = 'u32[72,128]{1,0:T(1,128)}', space=vmem, size = 0x9000, scoped, tag = 'internal scratch']
  %s0 = inlined_call_operand.vmem [shape: f32[8,32], index: 0, kind: input, shape index: {}]
  %s1 = inlined_call_operand.vmem [shape: s32[8,2], index: 1, kind: input, shape index: {}]
  %s2 = inlined_call_operand.vmem [shape: s32[2,8], index: 2, kind: input, shape index: {}]
  %s3 = inlined_call_operand.hbm [shape: f32[8,8], index: 3, kind: output, shape index: {0}]
  %s4 = inlined_call_operand.vmem [shape: f32[8,1], index: 4, kind: output, shape index: {1}]
  %5 = xla_tuple %s3, %s4
  %s6 = sld [smem:[#allocation0]]
  $region30: #{tpu_custom_call.1} parent=0
    _
  %s8 = ssub.s32 1, %s6
  %s9 = scalar_select 0, %s8, %s6
  $region1: #{tpu_custom_call.1} parent=0
    #allocation2 [shape = 'u8[4096]{0}', space=vmem, size = 0x1000, scoped, tag = 'output window, operand 0, single buffered']
    #allocation3 [shape = 's32[1]{0}', space=sflag, size = 0x4, scoped, tag = 'scoped memory for tpu_custom_call.1']
    %10 = vsyncpa [#allocation3], 0
    // Predicated region
    $region2: #{tpu_custom_call.1} parent=1 // pred_check
      _
    $region3: #{tpu_custom_call.1} parent=1 // pred_check_branch
      %12 = sbr.rel (0) target = $region5
    $region4: #{tpu_custom_call.1} parent=1 // pred_region
      _
    $region5: #{tpu_custom_call.1} parent=1 // pred_fallthru
      _
    // Predicated region
    $region6: #{tpu_custom_call.1} parent=1 // pred_check
      _
    $region7: #{tpu_custom_call.1} parent=1 // pred_check_branch
      %14 = sbr.rel (0) target = $region9
    $region8: #{tpu_custom_call.1} parent=1 // pred_region
      _
    $region9: #{tpu_custom_call.1} parent=1 // pred_fallthru
      _
    // Predicated region
    $region10: #{tpu_custom_call.1} parent=1 // pred_check
      _
    $region11: #{tpu_custom_call.1} parent=1 // pred_check_branch
      %16 = sbr.rel (0) target = $region13
    $region12: #{tpu_custom_call.1} parent=1 // pred_region
      _
    $region13: #{tpu_custom_call.1} parent=1 // pred_fallthru
      _
    %s17 = smul.u32 0, 8
    %v18 = vld [vmem:[%s0] sm:$0xff]
    %s19 = scalar_lea.vmem %s0, %s17
    %v20 = vld [vmem:[%s19] sm:$0xff]
    %vm21 = vcmask 261120
    %v23 = vsel %vm21, %v20, 0
    %v26 = vsel %vm21, %v18, 0
    %28 = vmatpush.xpose.msra.mxu0 0.0
    %29 = vmatpush.xpose.msra.mxu0 0.0
    %30 = vmatpush.xpose.msra.mxu0 0.0
    %31 = vmatpush.xpose.msra.mxu0 0.0
    %32 = vmatpush.xpose.msra.mxu0 0.0
    %33 = vmatpush.xpose.msra.mxu0 0.0
    %34 = vmatpush.xpose.msra.mxu0 0.0
    %35 = vmatpush.xpose.msra.mxu0 0.0
    %36 = vmatpush.xpose.msra.mxu0 0.0
    %37 = vmatpush.xpose.msra.mxu0 0.0
    %38 = vmatpush.xpose.msra.mxu0 0.0
    %39 = vmatpush.xpose.msra.mxu0 0.0
    %40 = vmatpush.xpose.msra.mxu0 0.0
    %41 = vmatpush.xpose.msra.mxu0 0.0
    %42 = vmatpush.xpose.msra.mxu0 0.0
    %43 = vmatpush.xpose.msra.mxu0 %v26
    %44 = vmatmul.f32.gmra.mxu0 %v23
    %v45 = vpop.f32.mrf.mxu0
    %v46 = vadd.f32 0.0, %v45
    %47 = vdwg.mxu0
    %vm48 = vcmask 64512
    %49 = vst.msk [vmem:[#allocation2] sm:$0xff] %vm48, %v46
    %v50 = vld [vmem:[%s1] sm:$0xff]
    %v51 = vld [vmem:[%s2] sm:$0x1]
    %v52 = vld [vmem:[%s2 + $0x1] sm:$0x1]
    %53 = vset.pattern.permute.xlu0 0
    %54 = vperm.xlu0 %53, %v50
    %v55 = vpop.permute.xlu0 %54
    %v56 = vperm.slane %v51, 0
    %vm57 = vcmp.eq.s32.totalorder %v55, %v56
    %vm58 = vcmp.ne.s32.totalorder %v55, %v56
    %vm59 = vcmp.gt.s32.totalorder %v50, 0
    %60 = vset.pattern.permute.xlu0 1
    %61 = vperm.xlu0 %60, %v50
    %v62 = vpop.permute.xlu0 %61
    %v63 = vperm.slane %v52, 0
    %v64 = vsub.s32 %v62, %v63
    %vm65 = vcmp.lt.s32.totalorder %v64, 0
    %v66 = vsel %vm59, 1, 0
    %67 = vset.pattern.permute.xlu0 1
    %68 = vperm.xlu0 %67, %v66
    %v69 = vpop.permute.xlu0 %68
    %vm70 = vcmp.eq.s32.totalorder %v69, 1
    %vm71 = vmor %vm70, %vm65
    %vm72 = vmand %vm58, %vm71
    %v73 = vmul.f32 %v46, 16.0
    %v74 = vsel %vm57, 1, 0
    %v75 = vcvt.s32.f32 %v74
    %v76 = vsel %vm48, %v75, 0.0
    %77 = vadd.xlane.f32.xlu0 %v76
    %v78 = vpop.xlane.xlu0 %77
    %v79 = vsel %vm57, %v73, 0.0
    %v80 = vsel %vm48, %v79, 0.0
    %81 = vadd.xlane.f32.xlu0 %v80
    %v82 = vpop.xlane.xlu0 %81
    %v83 = vmul.f32 %v73, 1.442695
    %v84 = vpow.pop %v83
    %v85 = vsel %vm72, %v84, 0.0
    %v86 = vsel %vm48, %v85, 0.0
    %87 = vadd.xlane.f32.xlu0 %v86
    %v88 = vpop.xlane.xlu0 %87
    %v89 = vadd.f32 %v84, %v88
    %v90 = vlog2.pop %v89
    %v91 = vmul.f32 %v90, 0.6931472
    %v92 = vsel %vm57, %v91, 0.0
    %v93 = vsel %vm48, %v92, 0.0
    %94 = vadd.xlane.f32.xlu0 %v93
    %v95 = vpop.xlane.xlu0 %94
    %v96 = vsub.f32 %v95, %v82
    %v97 = vrcp.pop %v78
    %v98 = vmul.f32 %v78, %v97
    %v99 = vsub.f32 1.0, %v98
    %v100 = vmul.f32 %v97, %v99
    %v101 = vadd.f32 %v97, %v100
    %vm102 = vweird.f32 %v78
    %vm103 = vweird.f32 %v97
    %vm104 = vmor %vm102, %vm103
    %v105 = vsel %vm104, %v97, %v101
    %v106 = vand.u32 2147483647, %v78
    %vm107 = vcmp.eq.f32.partialorder %v106, 8.507059e+37
    %v108 = vand.u32 %v78, 2147483648
    %v109 = vor.u32 1.1754944e-38, %v108
    %v110 = vsel %vm107, %v109, %v105
    %v111 = vmul.f32 %v96, %v110
    %vm112 = vcmask 7168
    %113 = vst.msk [vmem:[%s4] sm:$0xff] %vm112, %v111
    // Predicated region
    $region14: #{tpu_custom_call.1} parent=1 // pred_check
      _
    $region15: #{tpu_custom_call.1} parent=1 // pred_check_branch
      %115 = sbr.rel (0) target = $region17
    $region16: #{tpu_custom_call.1} parent=1 // pred_region
      %117 = vsyncadd [#allocation3], 0
      %s119 = sshll.u32 [#allocation2], 4
      %s120 = int_to_ptr.vmem [resolvable:$true] %s119
      %s121 = sshll.u32 %s3, 4
      %s122 = int_to_ptr.hbm [resolvable:$true] %s121
      %124 = dma.vmem_to_hbm [thread:$0]  %s120, 128, %s122, [#allocation3]
    $region17: #{tpu_custom_call.1} parent=1 // pred_fallthru
      _
    // Predicated region
    $region18: #{tpu_custom_call.1} parent=1 // pred_check
      _
    $region19: #{tpu_custom_call.1} parent=1 // pred_check_branch
      %126 = sbr.rel (0) target = $region21
    $region20: #{tpu_custom_call.1} parent=1 // pred_region
      _
    $region21: #{tpu_custom_call.1} parent=1 // pred_fallthru
      _
    // Predicated region
    $region22: #{tpu_custom_call.1} parent=1 // pred_check
      _
    $region23: #{tpu_custom_call.1} parent=1 // pred_check_branch
      %128 = sbr.rel (0) target = $region25
    $region24: #{tpu_custom_call.1} parent=1 // pred_region
      %130 = dma.done [#allocation3], 128
    $region25: #{tpu_custom_call.1} parent=1 // pred_fallthru
      _
    // Predicated region
    $region26: #{tpu_custom_call.1} parent=1 // pred_check
      _
    $region27: #{tpu_custom_call.1} parent=1 // pred_check_branch
      %132 = sbr.rel (0) target = $region29
    $region28: #{tpu_custom_call.1} parent=1 // pred_region
      _
    $region29: #{tpu_custom_call.1} parent=1 // pred_fallthru
      _
    %133 = vsyncpa [#allocation3], 1

// kernel: tpu_custom_call.1
$region0: #{tpu_custom_call.1}
  #allocation0 [shape = 'u32[]', space=smem, size = 0x4, offset = 0x4, fixed_abs, tag = 'smem constant byte address 0x4 - core index']
  #allocation1 [shape = 'u32[72,128]{1,0:T(1,128)}', space=vmem, size = 0x9000, scoped, tag = 'internal scratch']
  %s0 = inlined_call_operand.vmem [shape: f32[8,32], index: 0, kind: input, shape index: {}]
  %s1 = inlined_call_operand.vmem [shape: s32[8,2], index: 1, kind: input, shape index: {}]
  %s2 = inlined_call_operand.vmem [shape: s32[2,8], index: 2, kind: input, shape index: {}]
  %s3 = inlined_call_operand.hbm [shape: f32[8,8], index: 3, kind: output, shape index: {0}]
  %s4 = inlined_call_operand.vmem [shape: f32[8,1], index: 4, kind: output, shape index: {1}]
  %5 = xla_tuple %s3, %s4
  %s6 = sld [smem:[#allocation0]]
  $region30: #{tpu_custom_call.1} parent=0
    _
  %s8 = ssub.s32 1, %s6
  %s9 = scalar_select 0, %s8, %s6
  $region1: #{tpu_custom_call.1} parent=0
    #allocation2 [shape = 'u8[4096]{0}', space=vmem, size = 0x1000, scoped, tag = 'output window, operand 0, single buffered']
    #allocation3 [shape = 's32[1]{0}', space=sflag, size = 0x4, scoped, tag = 'scoped memory for tpu_custom_call.1']
    %10 = vsyncpa [#allocation3], 0
    // Predicated region
    $region2: #{tpu_custom_call.1} parent=1 // pred_check
      _
    $region3: #{tpu_custom_call.1} parent=1 // pred_check_branch
      %12 = sbr.rel (0) target = $region5
    $region4: #{tpu_custom_call.1} parent=1 // pred_region
      _
    $region5: #{tpu_custom_call.1} parent=1 // pred_fallthru
      _
    // Predicated region
    $region6: #{tpu_custom_call.1} parent=1 // pred_check
      _
    $region7: #{tpu_custom_call.1} parent=1 // pred_check_branch
      %14 = sbr.rel (0) target = $region9
    $region8: #{tpu_custom_call.1} parent=1 // pred_region
      _
    $region9: #{tpu_custom_call.1} parent=1 // pred_fallthru
      _
    // Predicated region
    $region10: #{tpu_custom_call.1} parent=1 // pred_check
      _
    $region11: #{tpu_custom_call.1} parent=1 // pred_check_branch
      %16 = sbr.rel (0) target = $region13
    $region12: #{tpu_custom_call.1} parent=1 // pred_region
      _
    $region13: #{tpu_custom_call.1} parent=1 // pred_fallthru
      _
    %s17 = smul.u32 0, 8
    %v18 = vld [vmem:[%s0] sm:$0xff]
    %s19 = scalar_lea.vmem %s0, %s17
    %v20 = vld [vmem:[%s19] sm:$0xff]
    %vm21 = vcmask 261120
    %v23 = vsel %vm21, %v20, 0
    %v26 = vsel %vm21, %v18, 0
    %28 = vmatpush.xpose.msra.mxu0 0.0
    %29 = vmatpush.xpose.msra.mxu0 0.0
    %30 = vmatpush.xpose.msra.mxu0 0.0
    %31 = vmatpush.xpose.msra.mxu0 0.0
    %32 = vmatpush.xpose.msra.mxu0 0.0
    %33 = vmatpush.xpose.msra.mxu0 0.0
    %34 = vmatpush.xpose.msra.mxu0 0.0
    %35 = vmatpush.xpose.msra.mxu0 0.0
    %36 = vmatpush.xpose.msra.mxu0 0.0
    %37 = vmatpush.xpose.msra.mxu0 0.0
    %38 = vmatpush.xpose.msra.mxu0 0.0
    %39 = vmatpush.xpose.msra.mxu0 0.0
    %40 = vmatpush.xpose.msra.mxu0 0.0
    %41 = vmatpush.xpose.msra.mxu0 0.0
    %42 = vmatpush.xpose.msra.mxu0 0.0
    %43 = vmatpush.xpose.msra.mxu0 %v26
    %44 = vmatmul.f32.gmra.mxu0 %v23
    %v45 = vpop.f32.mrf.mxu0
    %v46 = vadd.f32 0.0, %v45
    %47 = vdwg.mxu0
    %vm48 = vcmask 64512
    %49 = vst.msk [vmem:[#allocation2] sm:$0xff] %vm48, %v46
    %v50 = vld [vmem:[%s1] sm:$0xff]
    %v51 = vld [vmem:[%s2] sm:$0x1]
    %v52 = vld [vmem:[%s2 + $0x1] sm:$0x1]
    %53 = vset.pattern.permute.xlu0 0
    %54 = vperm.xlu0 %53, %v50
    %v55 = vpop.permute.xlu0 %54
    %v56 = vperm.slane %v51, 0
    %vm57 = vcmp.eq.s32.totalorder %v55, %v56
    %vm58 = vcmp.ne.s32.totalorder %v55, %v56
    %vm59 = vcmp.gt.s32.totalorder %v50, 0
    %60 = vset.pattern.permute.xlu0 1
    %61 = vperm.xlu0 %60, %v50
    %v62 = vpop.permute.xlu0 %61
    %v63 = vperm.slane %v52, 0
    %v64 = vsub.s32 %v62, %v63
    %vm65 = vcmp.lt.s32.totalorder %v64, 0
    %v66 = vsel %vm59, 1, 0
    %67 = vset.pattern.permute.xlu0 1
    %68 = vperm.xlu0 %67, %v66
    %v69 = vpop.permute.xlu0 %68
    %vm70 = vcmp.eq.s32.totalorder %v69, 1
    %vm71 = vmor %vm70, %vm65
    %vm72 = vmand %vm58, %vm71
    %v73 = vmul.f32 %v46, 16.0
    %v74 = vsel %vm57, 1, 0
    %v75 = vcvt.s32.f32 %v74
    %v76 = vsel %vm48, %v75, 0.0
    %77 = vadd.xlane.f32.xlu0 %v76
    %v78 = vpop.xlane.xlu0 %77
    %v79 = vsel %vm57, %v73, 0.0
    %v80 = vsel %vm48, %v79, 0.0
    %81 = vadd.xlane.f32.xlu0 %v80
    %v82 = vpop.xlane.xlu0 %81
    %v83 = vmul.f32 %v73, 1.442695
    %v84 = vpow.pop %v83
    %v85 = vsel %vm72, %v84, 0.0
    %v86 = vsel %vm48, %v85, 0.0
    %87 = vadd.xlane.f32.xlu0 %v86
    %v88 = vpop.xlane.xlu0 %87
    %v89 = vadd.f32 %v84, %v88
    %v90 = vlog2.pop %v89
    %v91 = vmul.f32 %v90, 0.6931472
    %v92 = vsel %vm57, %v91, 0.0
    %v93 = vsel %vm48, %v92, 0.0
    %94 = vadd.xlane.f32.xlu0 %v93
    %v95 = vpop.xlane.xlu0 %94
    %v96 = vsub.f32 %v95, %v82
    %v97 = vrcp.pop %v78
    %v98 = vmul.f32 %v78, %v97
    %v99 = vsub.f32 1.0, %v98
    %v100 = vmul.f32 %v97, %v99
    %v101 = vadd.f32 %v97, %v100
    %vm102 = vweird.f32 %v78
    %vm103 = vweird.f32 %v97
    %vm104 = vmor %vm102, %vm103
    %v105 = vsel %vm104, %v97, %v101
    %v106 = vand.u32 2147483647, %v78
    %vm107 = vcmp.eq.f32.partialorder %v106, 8.507059e+37
    %v108 = vand.u32 %v78, 2147483648
    %v109 = vor.u32 1.1754944e-38, %v108
    %v110 = vsel %vm107, %v109, %v105
    %v111 = vmul.f32 %v96, %v110
    %vm112 = vcmask 7168
    %113 = vst.msk [vmem:[%s4] sm:$0xff] %vm112, %v111
    // Predicated region
    $region14: #{tpu_custom_call.1} parent=1 // pred_check
      _
    $region15: #{tpu_custom_call.1} parent=1 // pred_check_branch
      %115 = sbr.rel (0) target = $region17
    $region16: #{tpu_custom_call.1} parent=1 // pred_region
      %117 = vsyncadd [#allocation3], 0
      %s119 = sshll.u32 [#allocation2], 4
      %s120 = int_to_ptr.vmem [resolvable:$true] %s119
      %s121 = sshll.u32 %s3, 4
      %s122 = int_to_ptr.hbm [resolvable:$true] %s121
      %124 = dma.vmem_to_hbm [thread:$0]  %s120, 128, %s122, [#allocation3]
    $region17: #{tpu_custom_call.1} parent=1 // pred_fallthru
      _
    // Predicated region
    $region18: #{tpu_custom_call.1} parent=1 // pred_check
      _
    $region19: #{tpu_custom_call.1} parent=1 // pred_check_branch
      %126 = sbr.rel (0) target = $region21
    $region20: #{tpu_custom_call.1} parent=1 // pred_region
      _
    $region21: #{tpu_custom_call.1} parent=1 // pred_fallthru
      _
    // Predicated region
    $region22: #{tpu_custom_call.1} parent=1 // pred_check
      _
    $region23: #{tpu_custom_call.1} parent=1 // pred_check_branch
      %128 = sbr.rel (0) target = $region25
    $region24: #{tpu_custom_call.1} parent=1 // pred_region
      %130 = dma.done [#allocation3], 128
    $region25: #{tpu_custom_call.1} parent=1 // pred_fallthru
      _
    // Predicated region
    $region26: #{tpu_custom_call.1} parent=1 // pred_check
      _
    $region27: #{tpu_custom_call.1} parent=1 // pred_check_branch
      %132 = sbr.rel (0) target = $region29
    $region28: #{tpu_custom_call.1} parent=1 // pred_region
      _
    $region29: #{tpu_custom_call.1} parent=1 // pred_fallthru
      _
    %133 = vsyncpa [#allocation3], 1

</llo_original>
